<compile_context>
chip_gen: v6e
topology: v6e:2x2x1
jax: 0.10.0
libtpu: 0.0.40
codegen_flags: <defaults>
</compile_context>

<pallas_src>
import math

import jax
import jax.numpy as jnp
from jax.experimental import pallas as pl
from jax.experimental.pallas import tpu as pltpu

LANE = 128          # TPU lane width
_IM2COL_MAX_K = 512  # use the single-GEMM im2col path when KH*KW*C <= this


def _round_up(x, m):
    return ((x + m - 1) // m) * m


def _pick_tile_oc(oc_pad):
    """128-wide OC tiles on v5e (128-wide MXU), 256-wide on v6e/v7x when OC allows."""
    tile = LANE
    if oc_pad % 256 == 0:
        try:
            kind = jax.devices()[0].device_kind.lower()
            if "v5" not in kind:
                tile = 256
        except Exception:  # pragma: no cover - conservative fallback
            tile = LANE
    return tile


# --------------------------------------------------------------------------------------
# Path A: im2col GEMM (small K = KH*KW*C).  One matmul + bias per grid step.
# --------------------------------------------------------------------------------------
def _gemm_bias_kernel(p_ref, w_ref, b_ref, o_ref):
    # p_ref : (TILE_M, K)        im2col patch rows
    # w_ref : (K, TILE_OC)       weight tile (constant index_map -> VMEM resident)
    # b_ref : (1, TILE_OC)       bias tile
    # o_ref : (TILE_M, TILE_OC)  lane-dense output tile
    acc = jnp.dot(p_ref[...], w_ref[...], preferred_element_type=jnp.float32)
    o_ref[...] = (acc + b_ref[...]).astype(o_ref.dtype)


def _conv2d_gemm_nhwc(x, w_kkco, bias, KH, KW, compute_dtype):
    N, H, Wd, C = x.shape
    OC = w_kkco.shape[-1]
    OH, OW = H - KH + 1, Wd - KW + 1
    K = KH * KW * C
    M = N * OH * OW
    out_dtype = x.dtype

    OC_pad = _round_up(OC, LANE)
    TILE_OC = _pick_tile_oc(OC_pad)

    # Sublane-aligned M tiles; split into >= 2 tiles when possible so both v7x
    # TensorCores get work, cap at 512 rows to bound per-step VMEM.
    if M <= 256:
        TILE_M = _round_up(M, 8)
    else:
        TILE_M = min(512, _round_up(-(-M // 2), 8))
    M_pad = _round_up(M, TILE_M)

    # Wrapper-side im2col: rows ordered (n, oh, ow), cols ordered (kh, kw, c) to match
    # the weight reshape below.  Cheap relative to the GEMM for small K.
    taps = [x[:, kh:kh + OH, kw:kw + OW, :] for kh in range(KH) for kw in range(KW)]
    patches = jnp.stack(taps, axis=3).reshape(M, K)
    if M_pad != M:
        patches = jnp.pad(patches, ((0, M_pad - M), (0, 0)))

    w_mat = w_kkco.reshape(K, OC)
    if OC_pad != OC:
        w_mat = jnp.pad(w_mat, ((0, 0), (0, OC_pad - OC)))
    b_row = jnp.pad(bias, (0, OC_pad - OC)).reshape(1, OC_pad)

    if compute_dtype is not None:
        patches = patches.astype(compute_dtype)
        w_mat = w_mat.astype(compute_dtype)

    grid = (M_pad // TILE_M, OC_pad // TILE_OC)

    out = pl.pallas_call(
        _gemm_bias_kernel,
        out_shape=jax.ShapeDtypeStruct((M_pad, OC_pad), out_dtype),
        grid_spec=pltpu.PrefetchScalarGridSpec(
            num_scalar_prefetch=0,
            grid=grid,
            in_specs=[
                pl.BlockSpec((TILE_M, K), lambda i, j: (i, 0)),
                pl.BlockSpec((K, TILE_OC), lambda i, j: (0, j)),
                pl.BlockSpec((1, TILE_OC), lambda i, j: (0, j)),
            ],
            out_specs=pl.BlockSpec((TILE_M, TILE_OC), lambda i, j: (i, j)),
        ),
        compiler_params=pltpu.CompilerParams(
            dimension_semantics=("parallel", "parallel"),
            # Per-step footprint here is < 1 MiB; 32 MiB is safe on every chip
            # (v5e default is only 16 MiB scoped).
            vmem_limit_bytes=32 * 1024 * 1024,
        ),
    )(patches, w_mat, b_row)

    out = out[:M].reshape(N, OH, OW, OC_pad)
    return out


# --------------------------------------------------------------------------------------
# Path B: tap-unrolled kernel (large C).  SSA accumulation, no VMEM scratch.
# --------------------------------------------------------------------------------------
def _make_tap_kernel(NB, H, Wd, C, TILE_OC, KH, KW):
    OH, OW = H - KH + 1, Wd - KW + 1
    M = NB * OH * OW

    def conv_kernel(x_ref, w_ref, b_ref, o_ref):
        # x_ref : (NB, H, W, C)          activation slab (NHWC)
        # w_ref : (KH, KW, C, TILE_OC)   weight tile (VMEM-resident, constant index_map)
        # b_ref : (1, TILE_OC)           bias tile
        # o_ref : (NB, OH, OW, TILE_OC)  lane-dense output tile
        acc = None
        # TODO(synk): for large images add an OH-block grid axis with a (KH-1)-row halo
        # and do the kw shift with pltpu.roll so this path stays under v7x's 64 MiB VMEM
        # and avoids the strided per-tap patch copy.
        for kh in range(KH):
            for kw in range(KW):
                patch = x_ref[:, kh:kh + OH, kw:kw + OW, :].reshape(M, C)
                d = jnp.dot(patch, w_ref[kh, kw], preferred_element_type=jnp.float32)
                acc = d if acc is None else acc + d
        out = acc + b_ref[...]
        o_ref[...] = out.reshape(NB, OH, OW, TILE_OC).astype(o_ref.dtype)

    return conv_kernel, OH, OW


def _conv2d_taps_nhwc(x, w_kkco, bias, KH, KW, compute_dtype):
    N, H, Wd, C = x.shape
    OC = w_kkco.shape[-1]
    out_dtype = x.dtype

    OC_pad = _round_up(OC, LANE)
    TILE_OC = _pick_tile_oc(OC_pad)

    OH, OW = H - KH + 1, Wd - KW + 1
    # Fold batch only when per-image output is small, keeping matmul M >= ~128 while
    # leaving >= 2 parallel grid slices when N > 1.
    NB = max(1, min(N, -(-128 // (OH * OW))))
    while N % NB:
        NB -= 1

    kernel, OH, OW = _make_tap_kernel(NB, H, Wd, C, TILE_OC, KH, KW)

    w_p = jnp.pad(w_kkco, ((0, 0), (0, 0), (0, 0), (0, OC_pad - OC)))
    b_row = jnp.pad(bias, (0, OC_pad - OC)).reshape(1, OC_pad)
    if compute_dtype is not None:
        x = x.astype(compute_dtype)
        w_p = w_p.astype(compute_dtype)

    grid = (N // NB, OC_pad // TILE_OC)

    out = pl.pallas_call(
        kernel,
        out_shape=jax.ShapeDtypeStruct((N, OH, OW, OC_pad), out_dtype),
        grid_spec=pltpu.PrefetchScalarGridSpec(
            num_scalar_prefetch=0,
            grid=grid,
            in_specs=[
                pl.BlockSpec((NB, H, Wd, C), lambda b_, j: (b_, 0, 0, 0)),
                pl.BlockSpec((KH, KW, C, TILE_OC), lambda b_, j: (0, 0, 0, j)),
                pl.BlockSpec((1, TILE_OC), lambda b_, j: (0, j)),
            ],
            out_specs=pl.BlockSpec((NB, OH, OW, TILE_OC), lambda b_, j: (b_, 0, 0, j)),
        ),
        compiler_params=pltpu.CompilerParams(
            dimension_semantics=("parallel", "parallel"),
            vmem_limit_bytes=32 * 1024 * 1024,
        ),
    )(x, w_p, b_row)
    return out


# --------------------------------------------------------------------------------------
# Public wrappers
# --------------------------------------------------------------------------------------
def my_conv2d_nhwc(x_nhwc, w_oihw, bias, compute_dtype=None):
    """NHWC fast path: returns (N, OH, OW, OC) with no layout round-trip."""
    OC, C, KH, KW = w_oihw.shape
    w = jnp.transpose(w_oihw, (2, 3, 1, 0))  # (KH, KW, C, OC)
    if KH * KW * C <= _IM2COL_MAX_K:
        out = _conv2d_gemm_nhwc(x_nhwc, w, bias, KH, KW, compute_dtype)
    else:
        out = _conv2d_taps_nhwc(x_nhwc, w, bias, KH, KW, compute_dtype)
    return out[..., :OC]  # drop OC lane padding


def my_conv2d(x_nchw, w_oihw, bias, compute_dtype=None):
    """Equivalent of F.conv2d(x, w, b) with stride=1, padding=0 (PyTorch NCHW/OIHW)."""
    x = jnp.transpose(x_nchw, (0, 2, 3, 1))             # NHWC
    out = my_conv2d_nhwc(x, w_oihw, bias, compute_dtype)
    return jnp.transpose(out, (0, 3, 1, 2))              # back to NCHW


def init_params(key, in_channels, out_channels, kernel_size):
    """Deterministic re-implementation of myConv2d.__init__ parameter init."""
    kh, kw = kernel_size
    sqrtk = math.sqrt(1.0 / (in_channels * kh * kw))
    kw_key, kb_key = jax.random.split(key)
    weight = jax.random.uniform(kw_key, (out_channels, in_channels, kh, kw),
                                minval=-sqrtk, maxval=sqrtk, dtype=jnp.float32)
    bias = jax.random.uniform(kb_key, (out_channels,),
                              minval=-sqrtk, maxval=sqrtk, dtype=jnp.float32)
    return weight, bias


if __name__ == "__main__":
    key = jax.random.PRNGKey(0)
    x_key, p_key = jax.random.split(key)

    N, C, H, W = 2, 4, 16, 16
    OC, KH, KW = 8, 3, 3

    x = jax.random.normal(x_key, (N, C, H, W), dtype=jnp.float32)
    weight, bias = init_params(p_key, C, OC, (KH, KW))

    out = my_conv2d(x, weight, bias)
    out = jax.block_until_ready(out)

    # Reference check against XLA's conv (same NCHW / OIHW convention as PyTorch).
    ref = jax.lax.conv_general_dilated(
        x, weight, window_strides=(1, 1), padding="VALID",
        dimension_numbers=("NCHW", "OIHW", "NCHW"),
    ) + bias[None, :, None, None]

    assert out.shape == (N, OC, H - KH + 1, W - KW + 1), out.shape
    assert jnp.allclose(out, ref, atol=1e-4, rtol=1e-4), "mismatch vs reference"

    print("KERNEL_OK")
</pallas_src>

<mosaic_0001>
module attributes {stable_mosaic.version = 11 : i64} {
  func.func @_gemm_bias_kernel(%arg0: i32, %arg1: i32, %arg2: memref<200x36xf32, #tpu.memory_space<vmem>>, %arg3: memref<36x128xf32, #tpu.memory_space<vmem>>, %arg4: memref<1x128xf32, #tpu.memory_space<vmem>>, %arg5: memref<200x128xf32, #tpu.memory_space<vmem>>) attributes {dimension_semantics = [#tpu.dimension_semantics<parallel>, #tpu.dimension_semantics<parallel>], iteration_bounds = array<i64: 2, 1>, scalar_prefetch = 0 : i64, scratch_operands = 0 : i64, tpu.core_type = #tpu.core_type<tc>, window_params = [{transform_indices = @transform_0, window_bounds = array<i64: 200, 36>}, {transform_indices = @transform_1, window_bounds = array<i64: 36, 128>}, {transform_indices = @transform_2, window_bounds = array<i64: 1, 128>}, {transform_indices = @transform_3, window_bounds = array<i64: 200, 128>}]} {
    %c0 = arith.constant 0 : index
    %c0_0 = arith.constant 0 : index
    %0 = vector.load %arg2[%c0, %c0_0] : memref<200x36xf32, #tpu.memory_space<vmem>>, vector<200x36xf32>
    %c0_1 = arith.constant 0 : index
    %c0_2 = arith.constant 0 : index
    %1 = vector.load %arg3[%c0_1, %c0_2] : memref<36x128xf32, #tpu.memory_space<vmem>>, vector<36x128xf32>
    %cst = arith.constant dense<0.000000e+00> : vector<200x128xf32>
    %2 = tpu.matmul %0, %1, %cst {dimension_numbers = #tpu.dot_dimension_numbers<[1], [0], [0], [1], [0, 0, 1, 1], [], []>} : vector<200x36xf32>, vector<36x128xf32>, vector<200x128xf32> -> vector<200x128xf32>
    %c0_3 = arith.constant 0 : index
    %c0_4 = arith.constant 0 : index
    %3 = vector.load %arg4[%c0_3, %c0_4] : memref<1x128xf32, #tpu.memory_space<vmem>>, vector<1x128xf32>
    %4 = vector.broadcast %3 : vector<1x128xf32> to vector<200x128xf32>
    %5 = arith.addf %2, %4 : vector<200x128xf32>
    %c0_5 = arith.constant 0 : index
    %c0_6 = arith.constant 0 : index
    %6 = vector.load %arg5[%c0_5, %c0_6] : memref<200x128xf32, #tpu.memory_space<vmem>>, vector<200x128xf32>
    tpu.vector_store %arg5[%c0_5, %c0_6], %5 {strides = array<i32>} : memref<200x128xf32, #tpu.memory_space<vmem>>, vector<200x128xf32>,
    return
  }
  func.func @transform_0(%arg0: i32, %arg1: i32) -> (i32, i32) {
    %c0_i32 = arith.constant 0 : i32
    %c0_i32_0 = arith.constant 0 : i32
    return %arg0, %c0_i32 : i32, i32
  }
  func.func @transform_1(%arg0: i32, %arg1: i32) -> (i32, i32) {
    %c0_i32 = arith.constant 0 : i32
    %c0_i32_0 = arith.constant 0 : i32
    return %c0_i32, %arg1 : i32, i32
  }
  func.func @transform_2(%arg0: i32, %arg1: i32) -> (i32, i32) {
    %c0_i32 = arith.constant 0 : i32
    %c0_i32_0 = arith.constant 0 : i32
    return %c0_i32, %arg1 : i32, i32
  }
  func.func @transform_3(%arg0: i32, %arg1: i32) -> (i32, i32) {
    %c0_i32 = arith.constant 0 : i32
    return %arg0, %arg1 : i32, i32
  }
}

</mosaic_0001>

<llo_original>
// kernel: tpu_custom_call.1
$region0: #{tpu_custom_call.1}
  #allocation0 [shape = 'u32[]', space=smem, size = 0x4, offset = 0x4, fixed_abs, tag = 'smem constant byte address 0x4 - core index']
  #allocation1 [shape = 'u32[144,128]{1,0:T(1,128)}', space=vmem, size = 0x12000, scoped, tag = 'internal scratch']
  %s0 = inlined_call_operand.vmem [shape: f32[400,36], index: 0, kind: input, shape index: {}]
  %s1 = inlined_call_operand.vmem [shape: f32[36,128], index: 1, kind: input, shape index: {}]
  %s2 = inlined_call_operand.vmem [shape: f32[1,128], index: 2, kind: input, shape index: {}]
  %s3 = inlined_call_operand.hbm [shape: f32[400,128], index: 3, kind: output, shape index: {}]
  %s4 = sld [smem:[#allocation0]]
  $region45: #{tpu_custom_call.1} parent=0
    _
  %s6 = ssub.s32 1, %s4
  %s7 = scalar_select 0, %s6, %s4
  $region1: #{tpu_custom_call.1} parent=0
    #allocation2 [shape = 'u8[204800]{0}', space=vmem, size = 0x32000, scoped, tag = 'output window, operand 0']
    #allocation3 [shape = 's32[2]{0}', space=sflag, size = 0x8, scoped, tag = 'scoped memory for tpu_custom_call.1']
    %8 = vsyncpa [#allocation3], 0
    %s9 = scalar_lea.sflag [#allocation3], 1
    %10 = vsyncpa %s9, 0
    loop: start=0, step=1, limit=4
    $region2: #{tpu_custom_call.1} parent=1 // loop_pre_header
      _
    $region3: #{tpu_custom_call.1} parent=1 // loop_header
      %s12 = sphi 0, %s16
      %p13 = scmp.ge.s32.totalorder %s12, 4
      %s19 = sphi 0, %s31
      %s20 = sphi 0, %s27
      %s21 = sphi 0, %s19
      %s22 = sphi 0, %s20
      %s23 = sphi 0, %s21
      %s24 = sphi 0, %s22
      %s34 = sphi 0, %s36
      %s37 = sphi 0, %s34
      %s38 = sphi 0, %s37
      %s54 = sphi 0, %s38
      %s60 = sphi 0, %s62
      %s63 = sphi 0, %s60
      %s64 = sphi 0, %s63
      %s80 = sphi 0, %s64
      %s86 = sphi 0, %s88
      %s89 = sphi 0, %s86
      %s90 = sphi 0, %s89
      %s106 = sphi 0, %s90
      %s114 = sphi 0, %s116
      %s117 = sphi 0, %s114
      %s118 = sphi 0, %s117
      %s134 = sphi 0, %s118
    $region4: #{tpu_custom_call.1} parent=1 // loop_header_branch
      %15 = sbr.rel (%p13) target = $region8
    $region5: #{tpu_custom_call.1} parent=1 // loop_body
      %s17 = ssub.s32 %s12, 1
      %s18 = ssub.s32 %s12, 2
      %s25 = sadd.s32 1, %s20
      %p26 = scmp.ge.s32.totalorder %s25, 1
      %s27 = scalar_select %p26, 0, %s25
      %s28 = sadd.s32 1, %s19
      %s29 = scalar_select %p26, %s28, %s19
      %p30 = scmp.ge.s32.totalorder %s29, 2
      %s31 = scalar_select %p30, 0, %s29
      %s32 = ssub.s32 %s19, %s31
      %p33 = scmp.eq.s32.totalorder %s32, 0
      %s35 = sadd.s32 %s34, 1
      %s36 = scalar_select %p33, %s34, %s35
      %p39 = pneg %p33
      %p40 = scmp.eq.s32.totalorder %s12, 1
      %p41 = por %p39, %p40
      %p42 = scmp.ne.s32.totalorder %s34, %s37
      %p43 = scmp.eq.s32.totalorder %s12, 0
      %p44 = por %p42, %p43
      %p45 = scmp.ne.s32.totalorder %s34, %s37
      %p46 = scmp.eq.s32.totalorder %s17, 1
      %p47 = por %p45, %p46
      %p48 = scmp.ne.s32.totalorder %s37, %s38
      %p49 = scmp.eq.s32.totalorder %s17, 0
      %p50 = por %p48, %p49
      %p51 = scmp.ne.s32.totalorder %s37, %s38
      %p52 = scmp.eq.s32.totalorder %s18, 1
      %p53 = por %p51, %p52
      %p55 = scmp.ne.s32.totalorder %s38, %s54
      %p56 = scmp.eq.s32.totalorder %s18, 0
      %p57 = por %p55, %p56
      %s58 = ssub.s32 %s20, %s27
      %p59 = scmp.eq.s32.totalorder %s58, 0
      %s61 = sadd.s32 %s60, 1
      %s62 = scalar_select %p59, %s60, %s61
      %p65 = pneg %p59
      %p66 = scmp.eq.s32.totalorder %s12, 1
      %p67 = por %p65, %p66
      %p68 = scmp.ne.s32.totalorder %s60, %s63
      %p69 = scmp.eq.s32.totalorder %s12, 0
      %p70 = por %p68, %p69
      %p71 = scmp.ne.s32.totalorder %s60, %s63
      %p72 = scmp.eq.s32.totalorder %s17, 1
      %p73 = por %p71, %p72
      %p74 = scmp.ne.s32.totalorder %s63, %s64
      %p75 = scmp.eq.s32.totalorder %s17, 0
      %p76 = por %p74, %p75
      %p77 = scmp.ne.s32.totalorder %s63, %s64
      %p78 = scmp.eq.s32.totalorder %s18, 1
      %p79 = por %p77, %p78
      %p81 = scmp.ne.s32.totalorder %s64, %s80
      %p82 = scmp.eq.s32.totalorder %s18, 0
      %p83 = por %p81, %p82
      %s84 = ssub.s32 %s20, %s27
      %p85 = scmp.eq.s32.totalorder %s84, 0
      %s87 = sadd.s32 %s86, 1
      %s88 = scalar_select %p85, %s86, %s87
      %p91 = pneg %p85
      %p92 = scmp.eq.s32.totalorder %s12, 1
      %p93 = por %p91, %p92
      %p94 = scmp.ne.s32.totalorder %s86, %s89
      %p95 = scmp.eq.s32.totalorder %s12, 0
      %p96 = por %p94, %p95
      %p97 = scmp.ne.s32.totalorder %s86, %s89
      %p98 = scmp.eq.s32.totalorder %s17, 1
      %p99 = por %p97, %p98
      %p100 = scmp.ne.s32.totalorder %s89, %s90
      %p101 = scmp.eq.s32.totalorder %s17, 0
      %p102 = por %p100, %p101
      %p103 = scmp.ne.s32.totalorder %s89, %s90
      %p104 = scmp.eq.s32.totalorder %s18, 1
      %p105 = por %p103, %p104
      %p107 = scmp.ne.s32.totalorder %s90, %s106
      %p108 = scmp.eq.s32.totalorder %s18, 0
      %p109 = por %p107, %p108
      %s110 = ssub.s32 %s19, %s31
      %s111 = ssub.s32 %s20, %s27
      %s112 = sor.u32 %s110, %s111
      %p113 = scmp.eq.s32.totalorder %s112, 0
      %s115 = sadd.s32 %s114, 1
      %s116 = scalar_select %p113, %s114, %s115
      %p119 = pneg %p113
      %p120 = scmp.eq.s32.totalorder %s12, 1
      %p121 = por %p119, %p120
      %p122 = scmp.ne.s32.totalorder %s114, %s117
      %p123 = scmp.eq.s32.totalorder %s12, 0
      %p124 = por %p122, %p123
      %p125 = scmp.ne.s32.totalorder %s114, %s117
      %p126 = scmp.eq.s32.totalorder %s17, 1
      %p127 = por %p125, %p126
      %p128 = scmp.ne.s32.totalorder %s117, %s118
      %p129 = scmp.eq.s32.totalorder %s17, 0
      %p130 = por %p128, %p129
      %p131 = scmp.ne.s32.totalorder %s117, %s118
      %p132 = scmp.eq.s32.totalorder %s18, 1
      %p133 = por %p131, %p132
      %p135 = scmp.ne.s32.totalorder %s118, %s134
      %p136 = scmp.eq.s32.totalorder %s18, 0
      %p137 = por %p135, %p136
      %p138 = scmp.le.s32.totalorder 1, %s12
      %p139 = scmp.lt.s32.totalorder %s12, 3
      %p140 = pnand %p138, %p139
      %p141 = pneg %p140
      // Predicated region
      $region9: #{tpu_custom_call.1} parent=5 // pred_check
        _
      $region10: #{tpu_custom_call.1} parent=5 // pred_check_branch
        %143 = sbr.rel (%p140) target = $region12
      $region11: #{tpu_custom_call.1} parent=5 // pred_region
        %s144 = ssub.s32 %s12, 1
        // Predicated region
        $region13: #{tpu_custom_call.1} parent=11 // pred_check
          %p145 = pneg %p76
        $region14: #{tpu_custom_call.1} parent=11 // pred_check_branch
          %147 = sbr.rel (%p145) target = $region16
        $region15: #{tpu_custom_call.1} parent=11 // pred_region
          %p148 = scmp.lt.s32.totalorder %s22, 0
          %s149 = scalar_select %p148, %s22, 0
          %s150 = smul.addr %s149, 8
          %s151 = scalar_lea.vmem %s1, %s150
        $region16: #{tpu_custom_call.1} parent=11 // pred_fallthru
          _
        // Predicated region
        $region17: #{tpu_custom_call.1} parent=11 // pred_check
          %p152 = pneg %p102
        $region18: #{tpu_custom_call.1} parent=11 // pred_check_branch
          %154 = sbr.rel (%p152) target = $region20
        $region19: #{tpu_custom_call.1} parent=11 // pred_region
          %p155 = scmp.lt.s32.totalorder %s22, 0
          %s156 = scalar_select %p155, %s22, 0
          %s157 = scalar_lea.vmem %s2, %s156
        $region20: #{tpu_custom_call.1} parent=11 // pred_fallthru
          _
      $region12: #{tpu_custom_call.1} parent=5 // pred_fallthru
        _
      %p158 = scmp.lt.s32.totalorder %s12, 2
      // Predicated region
      $region21: #{tpu_custom_call.1} parent=5 // pred_check
        %p159 = pneg %p158
      $region22: #{tpu_custom_call.1} parent=5 // pred_check_branch
        %161 = sbr.rel (%p159) target = $region24
      $region23: #{tpu_custom_call.1} parent=5 // pred_region
        // Predicated region
        $region25: #{tpu_custom_call.1} parent=23 // pred_check
          %p162 = pneg %p44
        $region26: #{tpu_custom_call.1} parent=23 // pred_check_branch
          %164 = sbr.rel (%p162) target = $region28
        $region27: #{tpu_custom_call.1} parent=23 // pred_region
          %s165 = smul.u32 25, %s19
          %p166 = scmp.lt.s32.totalorder %s165, 49
          %s167 = scalar_select %p166, %s165, 49
          %s168 = smul.addr %s167, 8
          %s169 = scalar_lea.vmem %s0, %s168
          %s170 = smul.u32 25, %s19
        $region28: #{tpu_custom_call.1} parent=23 // pred_fallthru
          _
      $region24: #{tpu_custom_call.1} parent=5 // pred_fallthru
        _
      %p171 = scmp.le.s32.totalorder 1, %s12
      %p172 = scmp.lt.s32.totalorder %s12, 3
      %p173 = pnand %p171, %p172
      %p174 = pneg %p173
      // Predicated region
      $region29: #{tpu_custom_call.1} parent=5 // pred_check
        _
      $region30: #{tpu_custom_call.1} parent=5 // pred_check_branch
        %176 = sbr.rel (%p173) target = $region32
      $region31: #{tpu_custom_call.1} parent=5 // pred_region
        %s177 = ssub.s32 %s12, 1
        %s178 = smul.u32 25, %s21
        %p179 = scmp.lt.s32.totalorder %s178, 49
        %s180 = scalar_select %p179, %s178, 49
        %s181 = smul.addr %s180, 8
        %s182 = scalar_lea.vmem %s0, %s181
        %p183 = pneg %p50
        %p184 = pneg %p47
        %p185 = scmp.lt.s32.totalorder %s22, 0
        %s186 = scalar_select %p185, %s22, 0
        %s187 = smul.addr %s186, 8
        %s188 = scalar_lea.vmem %s1, %s187
        %p189 = pneg %p76
        %p190 = pneg %p73
        %p191 = scmp.lt.s32.totalorder %s22, 0
        %s192 = scalar_select %p191, %s22, 0
        %s193 = scalar_lea.vmem %s2, %s192
        %p194 = pneg %p102
        %p195 = pneg %p99
        %p196 = pneg %p130
        %p197 = pneg %p127
        %s198 = sand.u32 %s117, 1
        %s199 = scalar_lea.sflag [#allocation3], %s198
        %s200 = sand.u32 %s117, 1
        %s201 = smul.addr %s200, 200
        %s202 = scalar_lea.vmem [#allocation2], %s201
        %s203 = smul.u32 25, %s21
        %p204 = scmp.lt.s32.totalorder %s203, 49
        %s205 = scalar_select %p204, %s203, 49
        %s206 = smul.addr %s205, 8
        %s207 = scalar_lea.vmem %s0, %s206
        %s208 = smul.u32 25, %s21
        %p209 = scmp.lt.s32.totalorder %s22, 0
        %s210 = scalar_select %p209, %s22, 0
        %s211 = smul.addr %s210, 8
        %s212 = scalar_lea.vmem %s1, %s211
        %p213 = scmp.lt.s32.totalorder %s22, 0
        %s214 = scalar_select %p213, %s22, 0
        %s215 = scalar_lea.vmem %s2, %s214
        %s216 = smul.u32 25, %s21
        %v217 = vld [vmem:[%s207] sm:$0xff]
        %v218 = vld [vmem:[%s207 + $0x8] sm:$0xff]
        %v219 = vld [vmem:[%s207 + $0x10] sm:$0xff]
        %v220 = vld [vmem:[%s207 + $0x18] sm:$0xff]
        %v221 = vld [vmem:[%s207 + $0x20] sm:$0xff]
        %v222 = vld [vmem:[%s207 + $0x28] sm:$0xff]
        %v223 = vld [vmem:[%s207 + $0x30] sm:$0xff]
        %v224 = vld [vmem:[%s207 + $0x38] sm:$0xff]
        %v225 = vld [vmem:[%s207 + $0x40] sm:$0xff]
        %v226 = vld [vmem:[%s207 + $0x48] sm:$0xff]
        %v227 = vld [vmem:[%s207 + $0x50] sm:$0xff]
        %v228 = vld [vmem:[%s207 + $0x58] sm:$0xff]
        %v229 = vld [vmem:[%s207 + $0x60] sm:$0xff]
        %v230 = vld [vmem:[%s207 + $0x68] sm:$0xff]
        %v231 = vld [vmem:[%s207 + $0x70] sm:$0xff]
        %v232 = vld [vmem:[%s207 + $0x78] sm:$0xff]
        %v233 = vld [vmem:[%s207 + $0x80] sm:$0xff]
        %v234 = vld [vmem:[%s207 + $0x88] sm:$0xff]
        %v235 = vld [vmem:[%s207 + $0x90] sm:$0xff]
        %v236 = vld [vmem:[%s207 + $0x98] sm:$0xff]
        %v237 = vld [vmem:[%s207 + $0xa0] sm:$0xff]
        %v238 = vld [vmem:[%s207 + $0xa8] sm:$0xff]
        %v239 = vld [vmem:[%s207 + $0xb0] sm:$0xff]
        %v240 = vld [vmem:[%s207 + $0xb8] sm:$0xff]
        %v241 = vld [vmem:[%s207 + $0xc0] sm:$0xff]
        %v242 = vld [vmem:[%s212] sm:$0xff]
        %v243 = vld [vmem:[%s212 + $0x8] sm:$0xff]
        %v244 = vld [vmem:[%s212 + $0x10] sm:$0xff]
        %v245 = vld [vmem:[%s212 + $0x18] sm:$0xff]
        %v246 = vld [vmem:[%s212 + $0x20] sm:$0xf]
        %v247 = vld [vmem:[%s215] sm:$0x1]
        %v249 = vlaneseq
        %v250 = vshrl.u32 %v249, 7
        %v251 = vsub.s32 0, %v250
        %v252 = vrot.slane %v247, %v251
        %vm254 = vcmask 293888
        %v256 = vsel %vm254, %v217, 0
        %v259 = vsel %vm254, %v218, 0
        %v262 = vsel %vm254, %v219, 0
        %v265 = vsel %vm254, %v220, 0
        %v268 = vsel %vm254, %v221, 0
        %v271 = vsel %vm254, %v222, 0
        %v274 = vsel %vm254, %v223, 0
        %v277 = vsel %vm254, %v224, 0
        %v280 = vsel %vm254, %v225, 0
        %v283 = vsel %vm254, %v226, 0
        %v286 = vsel %vm254, %v227, 0
        %v289 = vsel %vm254, %v228, 0
        %v292 = vsel %vm254, %v229, 0
        %v295 = vsel %vm254, %v230, 0
        %v298 = vsel %vm254, %v231, 0
        %v301 = vsel %vm254, %v232, 0
        %v304 = vsel %vm254, %v233, 0
        %v307 = vsel %vm254, %v234, 0
        %v310 = vsel %vm254, %v235, 0
        %v313 = vsel %vm254, %v236, 0
        %v316 = vsel %vm254, %v237, 0
        %v319 = vsel %vm254, %v238, 0
        %v322 = vsel %vm254, %v239, 0
        %v325 = vsel %vm254, %v240, 0
        %v328 = vsel %vm254, %v241, 0
        %vm330 = vcmask 1043456
        %v332 = vsel %vm330, %v246, 0
        %334 = vmatprep.subr.mxu0 0.0
        %335 = vmatpush1.msra.mxu0 0.0
        %336 = vmatprep.subr.mxu0 0.0
        %337 = vmatpush1.msra.mxu0 0.0
        %338 = vmatprep.subr.mxu0 0.0
        %339 = vmatpush1.msra.mxu0 0.0
        %340 = vmatprep.subr.mxu0 0.0
        %341 = vmatpush1.msra.mxu0 0.0
        %342 = vmatprep.subr.mxu0 0.0
        %343 = vmatpush1.msra.mxu0 0.0
        %344 = vmatprep.subr.mxu0 0.0
        %345 = vmatpush1.msra.mxu0 0.0
        %346 = vmatprep.subr.mxu0 0.0
        %347 = vmatpush1.msra.mxu0 0.0
        %348 = vmatprep.subr.mxu0 0.0
        %349 = vmatpush1.msra.mxu0 0.0
        %350 = vmatprep.subr.mxu0 0.0
        %351 = vmatpush1.msra.mxu0 0.0
        %352 = vmatprep.subr.mxu0 0.0
        %353 = vmatpush1.msra.mxu0 0.0
        %354 = vmatprep.subr.mxu0 0.0
        %355 = vmatpush1.msra.mxu0 0.0
        %356 = vmatprep.subr.mxu0 0.0
        %357 = vmatpush1.msra.mxu0 %v332
        %358 = vmatprep.subr.mxu0 0.0
        %359 = vmatpush1.msra.mxu0 %v245
        %360 = vmatprep.subr.mxu0 0.0
        %361 = vmatpush1.msra.mxu0 %v244
        %362 = vmatprep.subr.mxu0 0.0
        %363 = vmatpush1.msra.mxu0 %v243
        %364 = vmatprep.subr.mxu0 0.0
        %365 = vmatpush1.msra.mxu0 %v242
        %366 = vmatprep.subr.mxu0 0.0
        %367 = vmatpush2.msra.mxu0 0.0
        %368 = vmatprep.subr.mxu0 0.0
        %369 = vmatpush2.msra.mxu0 0.0
        %370 = vmatprep.subr.mxu0 0.0
        %371 = vmatpush2.msra.mxu0 0.0
        %372 = vmatprep.subr.mxu0 0.0
        %373 = vmatpush2.msra.mxu0 0.0
        %374 = vmatprep.subr.mxu0 0.0
        %375 = vmatpush2.msra.mxu0 0.0
        %376 = vmatprep.subr.mxu0 0.0
        %377 = vmatpush2.msra.mxu0 0.0
        %378 = vmatprep.subr.mxu0 0.0
        %379 = vmatpush2.msra.mxu0 0.0
        %380 = vmatprep.subr.mxu0 0.0
        %381 = vmatpush2.msra.mxu0 0.0
        %382 = vmatprep.subr.mxu0 0.0
        %383 = vmatpush2.msra.mxu0 0.0
        %384 = vmatprep.subr.mxu0 0.0
        %385 = vmatpush2.msra.mxu0 0.0
        %386 = vmatprep.subr.mxu0 0.0
        %387 = vmatpush2.msra.mxu0 0.0
        %388 = vmatprep.subr.mxu0 0.0
        %389 = vmatpush2.msra.mxu0 0.0
        %390 = vmatprep.subr.mxu0 0.0
        %391 = vmatpush2.msra.mxu0 0.0
        %392 = vmatprep.subr.mxu0 0.0
        %393 = vmatpush2.msra.mxu0 0.0
        %394 = vmatprep.subr.mxu0 0.0
        %395 = vmatpush2.msra.mxu0 0.0
        %396 = vmatprep.subr.mxu0 0.0
        %397 = vmatpush2.msra.mxu0 0.0
        %398 = vmatprep.mubr.f32.mxu0 0.0
        %399 = vmatmul.mubr.f32.gmra.mxu0 %v256
        %v400 = vpop.f32.mrf.mxu0
        %v401 = vadd.f32 %v252, %v400
        %v402 = vpop.f32.mrf.mxu0
        %403 = vmatprep.mubr.f32.mxu0 0.0
        %404 = vmatmul.mubr.f32.gmra.mxu0 %v259
        %v405 = vpop.f32.mrf.mxu0
        %v406 = vadd.f32 %v252, %v405
        %v407 = vpop.f32.mrf.mxu0
        %408 = vmatprep.mubr.f32.mxu0 0.0
        %409 = vmatmul.mubr.f32.gmra.mxu0 %v262
        %v410 = vpop.f32.mrf.mxu0
        %v411 = vadd.f32 %v252, %v410
        %v412 = vpop.f32.mrf.mxu0
        %413 = vmatprep.mubr.f32.mxu0 0.0
        %414 = vmatmul.mubr.f32.gmra.mxu0 %v265
        %v415 = vpop.f32.mrf.mxu0
        %v416 = vadd.f32 %v252, %v415
        %v417 = vpop.f32.mrf.mxu0
        %418 = vmatprep.mubr.f32.mxu0 0.0
        %419 = vmatmul.mubr.f32.gmra.mxu0 %v268
        %v420 = vpop.f32.mrf.mxu0
        %v421 = vadd.f32 %v252, %v420
        %v422 = vpop.f32.mrf.mxu0
        %423 = vmatprep.mubr.f32.mxu0 0.0
        %424 = vmatmul.mubr.f32.gmra.mxu0 %v271
        %v425 = vpop.f32.mrf.mxu0
        %v426 = vadd.f32 %v252, %v425
        %v427 = vpop.f32.mrf.mxu0
        %428 = vmatprep.mubr.f32.mxu0 0.0
        %429 = vmatmul.mubr.f32.gmra.mxu0 %v274
        %v430 = vpop.f32.mrf.mxu0
        %v431 = vadd.f32 %v252, %v430
        %v432 = vpop.f32.mrf.mxu0
        %433 = vmatprep.mubr.f32.mxu0 0.0
        %434 = vmatmul.mubr.f32.gmra.mxu0 %v277
        %v435 = vpop.f32.mrf.mxu0
        %v436 = vadd.f32 %v252, %v435
        %v437 = vpop.f32.mrf.mxu0
        %438 = vmatprep.mubr.f32.mxu0 0.0
        %439 = vmatmul.mubr.f32.gmra.mxu0 %v280
        %v440 = vpop.f32.mrf.mxu0
        %v441 = vadd.f32 %v252, %v440
        %v442 = vpop.f32.mrf.mxu0
        %443 = vmatprep.mubr.f32.mxu0 0.0
        %444 = vmatmul.mubr.f32.gmra.mxu0 %v283
        %v445 = vpop.f32.mrf.mxu0
        %v446 = vadd.f32 %v252, %v445
        %v447 = vpop.f32.mrf.mxu0
        %448 = vmatprep.mubr.f32.mxu0 0.0
        %449 = vmatmul.mubr.f32.gmra.mxu0 %v286
        %v450 = vpop.f32.mrf.mxu0
        %v451 = vadd.f32 %v252, %v450
        %v452 = vpop.f32.mrf.mxu0
        %453 = vmatprep.mubr.f32.mxu0 0.0
        %454 = vmatmul.mubr.f32.gmra.mxu0 %v289
        %v455 = vpop.f32.mrf.mxu0
        %v456 = vadd.f32 %v252, %v455
        %v457 = vpop.f32.mrf.mxu0
        %458 = vmatprep.mubr.f32.mxu0 0.0
        %459 = vmatmul.mubr.f32.gmra.mxu0 %v292
        %v460 = vpop.f32.mrf.mxu0
        %v461 = vadd.f32 %v252, %v460
        %v462 = vpop.f32.mrf.mxu0
        %463 = vmatprep.mubr.f32.mxu0 0.0
        %464 = vmatmul.mubr.f32.gmra.mxu0 %v295
        %v465 = vpop.f32.mrf.mxu0
        %v466 = vadd.f32 %v252, %v465
        %v467 = vpop.f32.mrf.mxu0
        %468 = vmatprep.mubr.f32.mxu0 0.0
        %469 = vmatmul.mubr.f32.gmra.mxu0 %v298
        %v470 = vpop.f32.mrf.mxu0
        %v471 = vadd.f32 %v252, %v470
        %v472 = vpop.f32.mrf.mxu0
        %473 = vmatprep.mubr.f32.mxu0 0.0
        %474 = vmatmul.mubr.f32.gmra.mxu0 %v301
        %v475 = vpop.f32.mrf.mxu0
        %v476 = vadd.f32 %v252, %v475
        %v477 = vpop.f32.mrf.mxu0
        %478 = vmatprep.mubr.f32.mxu0 0.0
        %479 = vmatmul.mubr.f32.gmra.mxu0 %v304
        %v480 = vpop.f32.mrf.mxu0
        %v481 = vadd.f32 %v252, %v480
        %v482 = vpop.f32.mrf.mxu0
        %483 = vmatprep.mubr.f32.mxu0 0.0
        %484 = vmatmul.mubr.f32.gmra.mxu0 %v307
        %v485 = vpop.f32.mrf.mxu0
        %v486 = vadd.f32 %v252, %v485
        %v487 = vpop.f32.mrf.mxu0
        %488 = vmatprep.mubr.f32.mxu0 0.0
        %489 = vmatmul.mubr.f32.gmra.mxu0 %v310
        %v490 = vpop.f32.mrf.mxu0
        %v491 = vadd.f32 %v252, %v490
        %v492 = vpop.f32.mrf.mxu0
        %493 = vmatprep.mubr.f32.mxu0 0.0
        %494 = vmatmul.mubr.f32.gmra.mxu0 %v313
        %v495 = vpop.f32.mrf.mxu0
        %v496 = vadd.f32 %v252, %v495
        %v497 = vpop.f32.mrf.mxu0
        %498 = vmatprep.mubr.f32.mxu0 0.0
        %499 = vmatmul.mubr.f32.gmra.mxu0 %v316
        %v500 = vpop.f32.mrf.mxu0
        %v501 = vadd.f32 %v252, %v500
        %v502 = vpop.f32.mrf.mxu0
        %503 = vmatprep.mubr.f32.mxu0 0.0
        %504 = vmatmul.mubr.f32.gmra.mxu0 %v319
        %v505 = vpop.f32.mrf.mxu0
        %v506 = vadd.f32 %v252, %v505
        %v507 = vpop.f32.mrf.mxu0
        %508 = vmatprep.mubr.f32.mxu0 0.0
        %509 = vmatmul.mubr.f32.gmra.mxu0 %v322
        %v510 = vpop.f32.mrf.mxu0
        %v511 = vadd.f32 %v252, %v510
        %v512 = vpop.f32.mrf.mxu0
        %513 = vmatprep.mubr.f32.mxu0 0.0
        %514 = vmatmul.mubr.f32.gmra.mxu0 %v325
        %v515 = vpop.f32.mrf.mxu0
        %v516 = vadd.f32 %v252, %v515
        %v517 = vpop.f32.mrf.mxu0
        %518 = vmatprep.mubr.f32.mxu0 0.0
        %519 = vmatmul.mubr.f32.gmra.mxu0 %v328
        %v520 = vpop.f32.mrf.mxu0
        %v521 = vadd.f32 %v252, %v520
        %v522 = vpop.f32.mrf.mxu0
        %523 = vdwg.mxu0
        %524 = vst [vmem:[%s202] sm:$0xff] %v401
        %525 = vst [vmem:[%s202 + $0x8] sm:$0xff] %v406
        %526 = vst [vmem:[%s202 + $0x10] sm:$0xff] %v411
        %527 = vst [vmem:[%s202 + $0x18] sm:$0xff] %v416
        %528 = vst [vmem:[%s202 + $0x20] sm:$0xff] %v421
        %529 = vst [vmem:[%s202 + $0x28] sm:$0xff] %v426
        %530 = vst [vmem:[%s202 + $0x30] sm:$0xff] %v431
        %531 = vst [vmem:[%s202 + $0x38] sm:$0xff] %v436
        %532 = vst [vmem:[%s202 + $0x40] sm:$0xff] %v441
        %533 = vst [vmem:[%s202 + $0x48] sm:$0xff] %v446
        %534 = vst [vmem:[%s202 + $0x50] sm:$0xff] %v451
        %535 = vst [vmem:[%s202 + $0x58] sm:$0xff] %v456
        %536 = vst [vmem:[%s202 + $0x60] sm:$0xff] %v461
        %537 = vst [vmem:[%s202 + $0x68] sm:$0xff] %v466
        %538 = vst [vmem:[%s202 + $0x70] sm:$0xff] %v471
        %539 = vst [vmem:[%s202 + $0x78] sm:$0xff] %v476
        %540 = vst [vmem:[%s202 + $0x80] sm:$0xff] %v481
        %541 = vst [vmem:[%s202 + $0x88] sm:$0xff] %v486
        %542 = vst [vmem:[%s202 + $0x90] sm:$0xff] %v491
        %543 = vst [vmem:[%s202 + $0x98] sm:$0xff] %v496
        %544 = vst [vmem:[%s202 + $0xa0] sm:$0xff] %v501
        %545 = vst [vmem:[%s202 + $0xa8] sm:$0xff] %v506
        %546 = vst [vmem:[%s202 + $0xb0] sm:$0xff] %v511
        %547 = vst [vmem:[%s202 + $0xb8] sm:$0xff] %v516
        %548 = vst [vmem:[%s202 + $0xc0] sm:$0xff] %v521
        %s549 = sand.u32 %s117, 1
        %s550 = scalar_lea.sflag [#allocation3], %s549
        %s551 = sand.u32 %s117, 1
        %s552 = smul.addr %s551, 200
        %s553 = scalar_lea.vmem [#allocation2], %s552
        // Predicated region
        $region33: #{tpu_custom_call.1} parent=31 // pred_check
          %p554 = pneg %p127
        $region34: #{tpu_custom_call.1} parent=31 // pred_check_branch
          %556 = sbr.rel (%p554) target = $region36
        $region35: #{tpu_custom_call.1} parent=31 // pred_region
          %s557 = smul.u32 25, %s21
          %s559 = ssub.s32 3200, 3200
          %560 = vsyncadd %s550, %s559
          %s561 = sadd.s32 %s22, %s557
          %s562 = smul.addr %s561, 128
          %s563 = scalar_lea.hbm %s3, %s562
          %s564 = sshll.u32 %s553, 4
          %s565 = int_to_ptr.vmem [resolvable:$true] %s564
          %570 = dma.vmem_to_hbm [thread:$0]  %s565, 3200, %s563, %s550, 128, 128, 8
        $region36: #{tpu_custom_call.1} parent=31 // pred_fallthru
          _
      $region32: #{tpu_custom_call.1} parent=5 // pred_fallthru
        _
      %p571 = scmp.le.s32.totalorder 2, %s12
      // Predicated region
      $region37: #{tpu_custom_call.1} parent=5 // pred_check
        %p572 = pneg %p571
      $region38: #{tpu_custom_call.1} parent=5 // pred_check_branch
        %574 = sbr.rel (%p572) target = $region40
      $region39: #{tpu_custom_call.1} parent=5 // pred_region
        %s575 = ssub.s32 %s12, 2
        // Predicated region
        $region41: #{tpu_custom_call.1} parent=39 // pred_check
          %p576 = pneg %p133
        $region42: #{tpu_custom_call.1} parent=39 // pred_check_branch
          %578 = sbr.rel (%p576) target = $region44
        $region43: #{tpu_custom_call.1} parent=39 // pred_region
          %s579 = sand.u32 %s118, 1
          %s580 = scalar_lea.sflag [#allocation3], %s579
          %s581 = sand.u32 %s118, 1
          %s582 = smul.addr %s581, 200
          %s583 = scalar_lea.vmem [#allocation2], %s582
          %584 = dma.done %s580, 3200
        $region44: #{tpu_custom_call.1} parent=39 // pred_fallthru
          _
      $region40: #{tpu_custom_call.1} parent=5 // pred_fallthru
        _
    $region6: #{tpu_custom_call.1} parent=1 // loop_footer
      %s16 = sadd.s32 1, %s12
    $region7: #{tpu_custom_call.1} parent=1 // loop_footer_branch
      %11 = sbr.rel target = $region3
    $region8: #{tpu_custom_call.1} parent=1 // loop_exit
      _
    %585 = vsyncpa [#allocation3], 1
    %s586 = scalar_lea.sflag [#allocation3], 1
    %587 = vsyncpa %s586, 1

</llo_original>
